<compile_context>
chip_gen: v6e
topology: v6e:2x2x1
jax: 0.10.0
libtpu: 0.0.40
codegen_flags: <defaults>
</compile_context>

<pallas_src>
import functools

import numpy as np
import jax
import jax.numpy as jnp
from jax.experimental import pallas as pl
from jax.experimental.pallas import tpu as pltpu


def _round_up(v, m):
    return (v + m - 1) // m * m


# --------------------------------------------------------------------------
# Kernel 1: block mask from the padded Bernoulli mask (tiled over batch).
#   Inputs : pmask block (nb, hp_al, wp_al) f32 (zero-padded Bernoulli mask)
#   Outputs: bm block    (nb, 1, H*W) f32 lane-dense block mask
#            sum         (1, 1) f32 running sum of the block mask (accumulator)
# --------------------------------------------------------------------------
def _block_mask_kernel(pmask_ref, bm_ref, sum_ref, *, block_size, weights,
                       out_h, out_w, separable):
    pm = pmask_ref[...]                                  # (nb, hp_al, wp_al)
    nb = pm.shape[0]

    if separable:
        # All-ones kernel on a {0,1} mask: conv >= 1  <=>  window max >= 1.
        # Separable 2-pass max: bs + bs shifted passes instead of bs*bs.
        colmax = pm[:, 0:out_h, :]
        for di in range(1, block_size):
            colmax = jnp.maximum(colmax, pm[:, di:di + out_h, :])
        acc = colmax[:, :, 0:out_w]
        for dj in range(1, block_size):
            acc = jnp.maximum(acc, colmax[:, :, dj:dj + out_w])
        hit = acc >= 1.0
    else:
        # Weighted (Gaussian) kernel: keep the shifted-sum conv.
        conv = jnp.zeros((nb, out_h, out_w), jnp.float32)
        for di in range(block_size):
            for dj in range(block_size):
                wgt = float(weights[di, dj])
                if wgt == 0.0:
                    continue
                conv = conv + wgt * pm[:, di:di + out_h, dj:dj + out_w]
        hit = conv >= 1.0

    bm2d = jnp.where(hit, 0.0, 1.0)                      # (nb, out_h, out_w)

    # Lane-dense store: flatten (out_h, out_w) -> out_h*out_w with static
    # per-row stores (avoids an in-kernel reshape and any host-side relayout).
    for ih in range(out_h):
        bm_ref[:, :, ih * out_w:(ih + 1) * out_w] = bm2d[:, ih:ih + 1, :]

    # Accumulate the global sum of the block mask (resident (1,1) output).
    @pl.when(pl.program_id(0) == 0)
    def _():
        sum_ref[...] = jnp.zeros_like(sum_ref)
    sum_ref[...] += jnp.sum(bm2d)


# --------------------------------------------------------------------------
# Kernel 2: streaming elementwise multiply (hot path, HBM-bound).
#   x_ref: (1, TC, H*W), bm_ref: (1, 1, H*W), scale_ref: (1, 1) in SMEM.
# --------------------------------------------------------------------------
def _apply_mask_kernel(x_ref, bm_ref, scale_ref, o_ref):
    x = x_ref[...].astype(jnp.float32)          # upcast once; stay in f32 vregs
    m = bm_ref[...] * scale_ref[0, 0]           # fold the global rescale here
    o_ref[...] = (x * m).astype(o_ref.dtype)


def _choose_channel_tile(n, c, hw, itemsize, budget=8 << 20, min_steps=4):
    """Largest channel tile that divides C, respects dtype sublane packing,
    keeps one block <= budget, and (when it does not shrink blocks below
    ~1 MiB) leaves >= min_steps flattened grid steps for pipeline overlap."""
    gran = max(8, 32 // itemsize)               # f32: 8, bf16: 16, int8/fp8: 32
    cands = [t for t in range(gran, c, gran) if c % t == 0] + [c]
    fitting = [t for t in cands if t * hw * itemsize <= budget]
    if not fitting:
        return min(cands)                       # smallest legal tile
    for t in sorted(fitting, reverse=True):
        if n * (c // t) >= min_steps and t * hw * itemsize >= (1 << 20):
            return t
    return max(fitting)


def _choose_batch_tile(n, hp_al, wp_al, hw, budget=2 << 20):
    """Batch tile for kernel 1: divisor of N keeping in+out block bytes small."""
    per = (hp_al * wp_al + hw) * 4
    cands = [t for t in range(1, n + 1) if n % t == 0 and t * per <= budget]
    return max(cands) if cands else 1


def _stream_semantics(grid_len):
    """On v7x, shard the mem-bound stream across both TensorCores; string
    'parallel' semantics are a near-no-op for codegen elsewhere."""
    kind = ""
    try:
        kind = jax.devices()[0].device_kind.lower()
    except Exception:
        pass
    if "7" in kind and grid_len >= 2:
        return (pltpu.CORE_PARALLEL,)
    return ("parallel",)


class DropBlock2D:
    """JAX/Pallas port of the PyTorch DropBlock2D module (forward pass)."""

    def __init__(self, drop_prob, block_size, test=False, gkernel=False):
        self.drop_prob = float(drop_prob)
        self.block_size = int(block_size)
        self.test = test
        self.gkernel = gkernel
        if gkernel:
            gx, gy = np.meshgrid(np.linspace(-1, 1, block_size),
                                 np.linspace(-1, 1, block_size))
            d = np.sqrt(gx * gx + gy * gy)
            sigma, mu = (0.75, 0.0)
            g = np.clip(np.exp(-((d - mu) ** 2 / (2.0 * sigma ** 2))) * 1.25, 0.0, 1.0)
            self.weights = g.astype(np.float32)
        else:
            self.weights = np.ones((block_size, block_size), np.float32)

    def _compute_gamma(self, h, w, mask_h, mask_w):
        feat_area = h * w
        mask_area = mask_h * mask_w
        return self.drop_prob / self.block_size ** 2 * (feat_area / mask_area)

    def sample_mask(self, key, n, mask_h, mask_w, gamma):
        return jax.random.bernoulli(key, gamma, (n, mask_h, mask_w)).astype(jnp.float32)

    def __call__(self, x, key, training=True):
        assert x.ndim == 4, "Expected input (N, C, H, W)"
        if (not training) or self.drop_prob == 0.0:
            return x

        n, c, h, w = x.shape
        bs = self.block_size
        delta = bs // 2
        mask_h, mask_w = h - delta, w - delta
        if mask_h <= 0 or mask_w <= 0:
            raise ValueError(
                f"Input of shape {tuple(x.shape)} is too small for block_size {bs}")

        pad = bs // 2 + 1
        conv_h = mask_h + 2 * pad - bs + 1
        conv_w = mask_w + 2 * pad - bs + 1
        if conv_h < h or conv_w < w:
            # TODO(synk): PyTorch's negative-crop path for block_size >= 7 yields a
            # degenerate 1x1 (or invalid) block mask; that corner case is not ported.
            raise NotImplementedError(
                f"block_size={bs} hits the degenerate PyTorch crop path")

        # ---- Bernoulli sampling + zero padding (plain-JAX glue) ----
        gamma = self._compute_gamma(h, w, mask_h, mask_w)
        mask = self.sample_mask(key, n, mask_h, mask_w, gamma)    # (N, mh, mw)

        # Pad low side by `pad` (the conv padding) and high side with zeros up
        # to an (8, 128)-aligned size that also covers all shifted reads
        # (h + bs - 1, w + bs - 1).  Extra zero padding does not change the
        # conv/max values at the kept output offsets.
        hp_need = max(mask_h + 2 * pad, h + bs - 1)
        wp_need = max(mask_w + 2 * pad, w + bs - 1)
        hp_al, wp_al = _round_up(hp_need, 8), _round_up(wp_need, 128)
        pmask = jnp.pad(mask, ((0, 0), (pad, hp_al - mask_h - pad),
                               (pad, wp_al - mask_w - pad)))

        hw = h * w
        nb = _choose_batch_tile(n, hp_al, wp_al, hw)
        separable = not self.gkernel

        # ---- Kernel 1: block mask (lane-dense) + its global sum ----
        bm, bm_sum = pl.pallas_call(
            functools.partial(_block_mask_kernel, block_size=bs,
                              weights=self.weights, out_h=h, out_w=w,
                              separable=separable),
            out_shape=(jax.ShapeDtypeStruct((n, 1, hw), jnp.float32),
                       jax.ShapeDtypeStruct((1, 1), jnp.float32)),
            grid=(n // nb,),
            in_specs=[pl.BlockSpec((nb, hp_al, wp_al), lambda i: (i, 0, 0))],
            out_specs=(pl.BlockSpec((nb, 1, hw), lambda i: (i, 0, 0)),
                       pl.BlockSpec((1, 1), lambda i: (0, 0))),
            compiler_params=pltpu.CompilerParams(
                dimension_semantics=("arbitrary",),     # sum accumulator
                vmem_limit_bytes=32 * 1024 * 1024),
        )(pmask)

        # ---- Single host-side divide; scale goes to SMEM in kernel 2 ----
        numel = float(n * hw)                            # block_mask.numel()
        # Guard against the all-dropped case (PyTorch would produce inf/nan);
        # bm is {0,1} so folding scale into the kernel is bit-identical.
        scale = (numel / jnp.maximum(bm_sum[0, 0], 1.0)).astype(jnp.float32)
        scale = scale.reshape(1, 1)

        # ---- Kernel 2: tiled, pipelined elementwise stream over x ----
        x3 = x.reshape(n, c, hw)                         # lane-dense layout
        tc = _choose_channel_tile(n, c, hw, x.dtype.itemsize)
        nj = c // tc
        grid_len = n * nj                                # flattened 1-D grid

        out = pl.pallas_call(
            _apply_mask_kernel,
            out_shape=jax.ShapeDtypeStruct((n, c, hw), x.dtype),
            grid=(grid_len,),
            in_specs=[
                pl.BlockSpec((1, tc, hw), lambda i: (i // nj, i % nj, 0)),
                pl.BlockSpec((1, 1, hw), lambda i: (i // nj, 0, 0)),
                pl.BlockSpec(memory_space=pltpu.MemorySpace.SMEM),
            ],
            out_specs=pl.BlockSpec((1, tc, hw), lambda i: (i // nj, i % nj, 0)),
            compiler_params=pltpu.CompilerParams(
                dimension_semantics=_stream_semantics(grid_len),
                vmem_limit_bytes=48 * 1024 * 1024),
        )(x3, bm, scale)
        return out.reshape(n, c, h, w)


# --------------------------------------------------------------------------
# Pure-JAX reference mirroring the PyTorch forward (same sampled mask).
# --------------------------------------------------------------------------
def _reference(x, mask, block_size, weights):
    n, c, h, w = x.shape
    pad = block_size // 2 + 1
    k = jnp.asarray(weights, jnp.float32)[None, None]              # (1,1,bs,bs)
    conv = jax.lax.conv_general_dilated(
        mask[:, None], k, window_strides=(1, 1),
        padding=[(pad, pad), (pad, pad)])
    conv = conv[:, :, :h, :w]
    bm = 1.0 - (conv >= 1.0).astype(jnp.float32)
    bm = bm[:, 0]                                                  # (N, H, W)
    scale = bm.size / jnp.maximum(jnp.sum(bm), 1.0)
    return x * bm[:, None, :, :] * scale


if __name__ == "__main__":
    key = jax.random.PRNGKey(0)
    kx, km = jax.random.split(key)

    N, C, H, W = 2, 4, 16, 16
    x = jax.random.normal(kx, (N, C, H, W), jnp.float32)

    db = DropBlock2D(drop_prob=0.1, block_size=3, gkernel=False)
    out = jax.block_until_ready(db(x, km, training=True))

    # verify against a pure-JAX reference using the same sampled mask
    mh, mw = H - db.block_size // 2, W - db.block_size // 2
    gamma = db._compute_gamma(H, W, mh, mw)
    mask = db.sample_mask(km, N, mh, mw, gamma)
    ref = _reference(x, mask, db.block_size, db.weights)
    np.testing.assert_allclose(np.asarray(out), np.asarray(ref), rtol=1e-5, atol=1e-5)

    print("KERNEL_OK")
</pallas_src>

<mosaic_0001>
module attributes {stable_mosaic.version = 11 : i64} {
  func.func @_block_mask_kernel(%arg0: i32, %arg1: memref<2x24x128xf32, #tpu.memory_space<vmem>>, %arg2: memref<2x1x256xf32, #tpu.memory_space<vmem>>, %arg3: memref<1x1xf32, #tpu.memory_space<vmem>>) attributes {dimension_semantics = [#tpu.dimension_semantics<arbitrary>], iteration_bounds = array<i64: 1>, scalar_prefetch = 0 : i64, scratch_operands = 0 : i64, tpu.core_type = #tpu.core_type<tc>, window_params = [{transform_indices = @transform_0, window_bounds = array<i64: 2, 24, 128>}, {transform_indices = @transform_1, window_bounds = array<i64: 2, 1, 256>}, {pipeline_mode = #tpu.pipeline_mode<synchronous>, transform_indices = @transform_2, window_bounds = array<i64: 1, 1>}]} {
    %c0 = arith.constant 0 : index
    %c0_0 = arith.constant 0 : index
    %c0_1 = arith.constant 0 : index
    %0 = vector.load %arg1[%c0, %c0_0, %c0_1] : memref<2x24x128xf32, #tpu.memory_space<vmem>>, vector<2x24x128xf32>
    %1 = vector.extract_strided_slice %0 {offsets = [0, 0, 0], sizes = [2, 16, 128], strides = [1, 1, 1]} : vector<2x24x128xf32> to vector<2x16x128xf32>
    %2 = vector.extract_strided_slice %0 {offsets = [0, 1, 0], sizes = [2, 16, 128], strides = [1, 1, 1]} : vector<2x24x128xf32> to vector<2x16x128xf32>
    %3 = arith.maximumf %1, %2 : vector<2x16x128xf32>
    %4 = vector.extract_strided_slice %0 {offsets = [0, 2, 0], sizes = [2, 16, 128], strides = [1, 1, 1]} : vector<2x24x128xf32> to vector<2x16x128xf32>
    %5 = arith.maximumf %3, %4 : vector<2x16x128xf32>
    %6 = vector.extract_strided_slice %5 {offsets = [0, 0, 0], sizes = [2, 16, 16], strides = [1, 1, 1]} : vector<2x16x128xf32> to vector<2x16x16xf32>
    %7 = vector.extract_strided_slice %5 {offsets = [0, 0, 1], sizes = [2, 16, 16], strides = [1, 1, 1]} : vector<2x16x128xf32> to vector<2x16x16xf32>
    %8 = arith.maximumf %6, %7 : vector<2x16x16xf32>
    %9 = vector.extract_strided_slice %5 {offsets = [0, 0, 2], sizes = [2, 16, 16], strides = [1, 1, 1]} : vector<2x16x128xf32> to vector<2x16x16xf32>
    %10 = arith.maximumf %8, %9 : vector<2x16x16xf32>
    %cst = arith.constant 1.000000e+00 : f32
    %11 = vector.broadcast %cst : f32 to vector<2x16x16xf32>
    %12 = arith.cmpf oge, %10, %11 : vector<2x16x16xf32>
    %cst_2 = arith.constant 0.000000e+00 : f32
    %cst_3 = arith.constant 1.000000e+00 : f32
    %13 = vector.broadcast %cst_2 : f32 to vector<2x16x16xf32>
    %14 = vector.broadcast %cst_3 : f32 to vector<2x16x16xf32>
    %15 = arith.select %12, %13, %14 : vector<2x16x16xi1>, vector<2x16x16xf32>
    %16 = vector.extract_strided_slice %15 {offsets = [0, 0, 0], sizes = [2, 1, 16], strides = [1, 1, 1]} : vector<2x16x16xf32> to vector<2x1x16xf32>
    %c0_4 = arith.constant 0 : index
    %c0_5 = arith.constant 0 : index
    %c0_6 = arith.constant 0 : index
    %17 = vector.load %arg2[%c0_4, %c0_5, %c0_6] : memref<2x1x256xf32, #tpu.memory_space<vmem>>, vector<2x1x16xf32>
    tpu.vector_store %arg2[%c0_4, %c0_5, %c0_6], %16 {strides = array<i32>} : memref<2x1x256xf32, #tpu.memory_space<vmem>>, vector<2x1x16xf32>,
    %18 = vector.extract_strided_slice %15 {offsets = [0, 1, 0], sizes = [2, 1, 16], strides = [1, 1, 1]} : vector<2x16x16xf32> to vector<2x1x16xf32>
    %c0_7 = arith.constant 0 : index
    %c0_8 = arith.constant 0 : index
    %c16 = arith.constant 16 : index
    %19 = vector.load %arg2[%c0_7, %c0_8, %c16] : memref<2x1x256xf32, #tpu.memory_space<vmem>>, vector<2x1x16xf32>
    tpu.vector_store %arg2[%c0_7, %c0_8, %c16], %18 {strides = array<i32>} : memref<2x1x256xf32, #tpu.memory_space<vmem>>, vector<2x1x16xf32>,
    %20 = vector.extract_strided_slice %15 {offsets = [0, 2, 0], sizes = [2, 1, 16], strides = [1, 1, 1]} : vector<2x16x16xf32> to vector<2x1x16xf32>
    %c0_9 = arith.constant 0 : index
    %c0_10 = arith.constant 0 : index
    %c32 = arith.constant 32 : index
    %21 = vector.load %arg2[%c0_9, %c0_10, %c32] : memref<2x1x256xf32, #tpu.memory_space<vmem>>, vector<2x1x16xf32>
    tpu.vector_store %arg2[%c0_9, %c0_10, %c32], %20 {strides = array<i32>} : memref<2x1x256xf32, #tpu.memory_space<vmem>>, vector<2x1x16xf32>,
    %22 = vector.extract_strided_slice %15 {offsets = [0, 3, 0], sizes = [2, 1, 16], strides = [1, 1, 1]} : vector<2x16x16xf32> to vector<2x1x16xf32>
    %c0_11 = arith.constant 0 : index
    %c0_12 = arith.constant 0 : index
    %c48 = arith.constant 48 : index
    %23 = vector.load %arg2[%c0_11, %c0_12, %c48] : memref<2x1x256xf32, #tpu.memory_space<vmem>>, vector<2x1x16xf32>
    tpu.vector_store %arg2[%c0_11, %c0_12, %c48], %22 {strides = array<i32>} : memref<2x1x256xf32, #tpu.memory_space<vmem>>, vector<2x1x16xf32>,
    %24 = vector.extract_strided_slice %15 {offsets = [0, 4, 0], sizes = [2, 1, 16], strides = [1, 1, 1]} : vector<2x16x16xf32> to vector<2x1x16xf32>
    %c0_13 = arith.constant 0 : index
    %c0_14 = arith.constant 0 : index
    %c64 = arith.constant 64 : index
    %25 = vector.load %arg2[%c0_13, %c0_14, %c64] : memref<2x1x256xf32, #tpu.memory_space<vmem>>, vector<2x1x16xf32>
    tpu.vector_store %arg2[%c0_13, %c0_14, %c64], %24 {strides = array<i32>} : memref<2x1x256xf32, #tpu.memory_space<vmem>>, vector<2x1x16xf32>,
    %26 = vector.extract_strided_slice %15 {offsets = [0, 5, 0], sizes = [2, 1, 16], strides = [1, 1, 1]} : vector<2x16x16xf32> to vector<2x1x16xf32>
    %c0_15 = arith.constant 0 : index
    %c0_16 = arith.constant 0 : index
    %c80 = arith.constant 80 : index
    %27 = vector.load %arg2[%c0_15, %c0_16, %c80] : memref<2x1x256xf32, #tpu.memory_space<vmem>>, vector<2x1x16xf32>
    tpu.vector_store %arg2[%c0_15, %c0_16, %c80], %26 {strides = array<i32>} : memref<2x1x256xf32, #tpu.memory_space<vmem>>, vector<2x1x16xf32>,
    %28 = vector.extract_strided_slice %15 {offsets = [0, 6, 0], sizes = [2, 1, 16], strides = [1, 1, 1]} : vector<2x16x16xf32> to vector<2x1x16xf32>
    %c0_17 = arith.constant 0 : index
    %c0_18 = arith.constant 0 : index
    %c96 = arith.constant 96 : index
    %29 = vector.load %arg2[%c0_17, %c0_18, %c96] : memref<2x1x256xf32, #tpu.memory_space<vmem>>, vector<2x1x16xf32>
    tpu.vector_store %arg2[%c0_17, %c0_18, %c96], %28 {strides = array<i32>} : memref<2x1x256xf32, #tpu.memory_space<vmem>>, vector<2x1x16xf32>,
    %30 = vector.extract_strided_slice %15 {offsets = [0, 7, 0], sizes = [2, 1, 16], strides = [1, 1, 1]} : vector<2x16x16xf32> to vector<2x1x16xf32>
    %c0_19 = arith.constant 0 : index
    %c0_20 = arith.constant 0 : index
    %c112 = arith.constant 112 : index
    %31 = vector.load %arg2[%c0_19, %c0_20, %c112] : memref<2x1x256xf32, #tpu.memory_space<vmem>>, vector<2x1x16xf32>
    tpu.vector_store %arg2[%c0_19, %c0_20, %c112], %30 {strides = array<i32>} : memref<2x1x256xf32, #tpu.memory_space<vmem>>, vector<2x1x16xf32>,
    %32 = vector.extract_strided_slice %15 {offsets = [0, 8, 0], sizes = [2, 1, 16], strides = [1, 1, 1]} : vector<2x16x16xf32> to vector<2x1x16xf32>
    %c0_21 = arith.constant 0 : index
    %c0_22 = arith.constant 0 : index
    %c128 = arith.constant 128 : index
    %33 = vector.load %arg2[%c0_21, %c0_22, %c128] : memref<2x1x256xf32, #tpu.memory_space<vmem>>, vector<2x1x16xf32>
    tpu.vector_store %arg2[%c0_21, %c0_22, %c128], %32 {strides = array<i32>} : memref<2x1x256xf32, #tpu.memory_space<vmem>>, vector<2x1x16xf32>,
    %34 = vector.extract_strided_slice %15 {offsets = [0, 9, 0], sizes = [2, 1, 16], strides = [1, 1, 1]} : vector<2x16x16xf32> to vector<2x1x16xf32>
    %c0_23 = arith.constant 0 : index
    %c0_24 = arith.constant 0 : index
    %c144 = arith.constant 144 : index
    %35 = vector.load %arg2[%c0_23, %c0_24, %c144] : memref<2x1x256xf32, #tpu.memory_space<vmem>>, vector<2x1x16xf32>
    tpu.vector_store %arg2[%c0_23, %c0_24, %c144], %34 {strides = array<i32>} : memref<2x1x256xf32, #tpu.memory_space<vmem>>, vector<2x1x16xf32>,
    %36 = vector.extract_strided_slice %15 {offsets = [0, 10, 0], sizes = [2, 1, 16], strides = [1, 1, 1]} : vector<2x16x16xf32> to vector<2x1x16xf32>
    %c0_25 = arith.constant 0 : index
    %c0_26 = arith.constant 0 : index
    %c160 = arith.constant 160 : index
    %37 = vector.load %arg2[%c0_25, %c0_26, %c160] : memref<2x1x256xf32, #tpu.memory_space<vmem>>, vector<2x1x16xf32>
    tpu.vector_store %arg2[%c0_25, %c0_26, %c160], %36 {strides = array<i32>} : memref<2x1x256xf32, #tpu.memory_space<vmem>>, vector<2x1x16xf32>,
    %38 = vector.extract_strided_slice %15 {offsets = [0, 11, 0], sizes = [2, 1, 16], strides = [1, 1, 1]} : vector<2x16x16xf32> to vector<2x1x16xf32>
    %c0_27 = arith.constant 0 : index
    %c0_28 = arith.constant 0 : index
    %c176 = arith.constant 176 : index
    %39 = vector.load %arg2[%c0_27, %c0_28, %c176] : memref<2x1x256xf32, #tpu.memory_space<vmem>>, vector<2x1x16xf32>
    tpu.vector_store %arg2[%c0_27, %c0_28, %c176], %38 {strides = array<i32>} : memref<2x1x256xf32, #tpu.memory_space<vmem>>, vector<2x1x16xf32>,
    %40 = vector.extract_strided_slice %15 {offsets = [0, 12, 0], sizes = [2, 1, 16], strides = [1, 1, 1]} : vector<2x16x16xf32> to vector<2x1x16xf32>
    %c0_29 = arith.constant 0 : index
    %c0_30 = arith.constant 0 : index
    %c192 = arith.constant 192 : index
    %41 = vector.load %arg2[%c0_29, %c0_30, %c192] : memref<2x1x256xf32, #tpu.memory_space<vmem>>, vector<2x1x16xf32>
    tpu.vector_store %arg2[%c0_29, %c0_30, %c192], %40 {strides = array<i32>} : memref<2x1x256xf32, #tpu.memory_space<vmem>>, vector<2x1x16xf32>,
    %42 = vector.extract_strided_slice %15 {offsets = [0, 13, 0], sizes = [2, 1, 16], strides = [1, 1, 1]} : vector<2x16x16xf32> to vector<2x1x16xf32>
    %c0_31 = arith.constant 0 : index
    %c0_32 = arith.constant 0 : index
    %c208 = arith.constant 208 : index
    %43 = vector.load %arg2[%c0_31, %c0_32, %c208] : memref<2x1x256xf32, #tpu.memory_space<vmem>>, vector<2x1x16xf32>
    tpu.vector_store %arg2[%c0_31, %c0_32, %c208], %42 {strides = array<i32>} : memref<2x1x256xf32, #tpu.memory_space<vmem>>, vector<2x1x16xf32>,
    %44 = vector.extract_strided_slice %15 {offsets = [0, 14, 0], sizes = [2, 1, 16], strides = [1, 1, 1]} : vector<2x16x16xf32> to vector<2x1x16xf32>
    %c0_33 = arith.constant 0 : index
    %c0_34 = arith.constant 0 : index
    %c224 = arith.constant 224 : index
    %45 = vector.load %arg2[%c0_33, %c0_34, %c224] : memref<2x1x256xf32, #tpu.memory_space<vmem>>, vector<2x1x16xf32>
    tpu.vector_store %arg2[%c0_33, %c0_34, %c224], %44 {strides = array<i32>} : memref<2x1x256xf32, #tpu.memory_space<vmem>>, vector<2x1x16xf32>,
    %46 = vector.extract_strided_slice %15 {offsets = [0, 15, 0], sizes = [2, 1, 16], strides = [1, 1, 1]} : vector<2x16x16xf32> to vector<2x1x16xf32>
    %c0_35 = arith.constant 0 : index
    %c0_36 = arith.constant 0 : index
    %c240 = arith.constant 240 : index
    %47 = vector.load %arg2[%c0_35, %c0_36, %c240] : memref<2x1x256xf32, #tpu.memory_space<vmem>>, vector<2x1x16xf32>
    tpu.vector_store %arg2[%c0_35, %c0_36, %c240], %46 {strides = array<i32>} : memref<2x1x256xf32, #tpu.memory_space<vmem>>, vector<2x1x16xf32>,
    %c0_i32 = arith.constant 0 : i32
    %48 = arith.cmpi eq, %arg0, %c0_i32 : i32
    %49 = arith.extui %48 : i1 to i32
    %c0_i32_37 = arith.constant 0 : i32
    %50 = arith.cmpi ne, %49, %c0_i32_37 : i32
    scf.if %50 {
      %cst_43 = arith.constant 0.000000e+00 : f32
      %59 = vector.broadcast %cst_43 : f32 to vector<1x1xf32>
      %c0_44 = arith.constant 0 : index
      %c0_45 = arith.constant 0 : index
      %60 = vector.load %arg3[%c0_44, %c0_45] : memref<1x1xf32, #tpu.memory_space<vmem>>, vector<1x1xf32>
      tpu.vector_store %arg3[%c0_44, %c0_45], %59 {strides = array<i32>} : memref<1x1xf32, #tpu.memory_space<vmem>>, vector<1x1xf32>,
    } else {
    }
    %c0_38 = arith.constant 0 : index
    %c0_39 = arith.constant 0 : index
    %51 = vector.load %arg3[%c0_38, %c0_39] : memref<1x1xf32, #tpu.memory_space<vmem>>, vector<1x1xf32>
    %52 = vector.shape_cast %15 : vector<2x16x16xf32> to vector<1x2x16x16xf32>
    %cst_40 = arith.constant dense<0.000000e+00> : vector<1xf32>
    %53 = vector.multi_reduction <add>, %52, %cst_40 [1, 2, 3] : vector<1x2x16x16xf32> to vector<1xf32>
    %54 = vector.shape_cast %53 : vector<1xf32> to vector<1x1x1x1xf32>
    %55 = vector.extract %54[0, 0, 0, 0] : f32 from vector<1x1x1x1xf32>
    %56 = vector.broadcast %55 : f32 to vector<1x1xf32>
    %57 = arith.addf %51, %56 : vector<1x1xf32>
    %c0_41 = arith.constant 0 : index
    %c0_42 = arith.constant 0 : index
    %58 = vector.load %arg3[%c0_41, %c0_42] : memref<1x1xf32, #tpu.memory_space<vmem>>, vector<1x1xf32>
    tpu.vector_store %arg3[%c0_41, %c0_42], %57 {strides = array<i32>} : memref<1x1xf32, #tpu.memory_space<vmem>>, vector<1x1xf32>,
    return
  }
  func.func @transform_0(%arg0: i32) -> (i32, i32, i32) {
    %c0_i32 = arith.constant 0 : i32
    %c0_i32_0 = arith.constant 0 : i32
    %c0_i32_1 = arith.constant 0 : i32
    return %arg0, %c0_i32, %c0_i32_0 : i32, i32, i32
  }
  func.func @transform_1(%arg0: i32) -> (i32, i32, i32) {
    %c0_i32 = arith.constant 0 : i32
    %c0_i32_0 = arith.constant 0 : i32
    %c0_i32_1 = arith.constant 0 : i32
    return %arg0, %c0_i32, %c0_i32_0 : i32, i32, i32
  }
  func.func @transform_2(%arg0: i32) -> (i32, i32) {
    %c0_i32 = arith.constant 0 : i32
    %c0_i32_0 = arith.constant 0 : i32
    %c0_i32_1 = arith.constant 0 : i32
    return %c0_i32, %c0_i32_0 : i32, i32
  }
}

</mosaic_0001>

<llo_original>
// kernel: tpu_custom_call.1
$region0: #{tpu_custom_call.1}
  #allocation0 [shape = 'u32[]', space=smem, size = 0x4, offset = 0x4, fixed_abs, tag = 'smem constant byte address 0x4 - core index']
  #allocation1 [shape = 'u32[144,128]{1,0:T(1,128)}', space=vmem, size = 0x12000, scoped, tag = 'internal scratch']
  %s0 = inlined_call_operand.hbm [shape: f32[2,24,128], index: 0, kind: input, shape index: {}]
  %s1 = inlined_call_operand.hbm [shape: f32[2,1,256], index: 1, kind: output, shape index: {0}]
  %s2 = inlined_call_operand.hbm [shape: f32[1,1], index: 2, kind: output, shape index: {1}]
  %3 = xla_tuple %s1, %s2
  %s4 = sld [smem:[#allocation0]]
  $region30: #{tpu_custom_call.1} parent=0
    _
  %s6 = ssub.s32 1, %s4
  %s7 = scalar_select 0, %s6, %s4
  $region1: #{tpu_custom_call.1} parent=0
    #allocation2 [shape = 'u8[24576]{0}', space=vmem, size = 0x6000, scoped, tag = 'input window, operand 0, single buffered']
    #allocation3 [shape = 's32[1]{0}', space=sflag, size = 0x4, scoped, tag = 'scoped memory for tpu_custom_call.1']
    #allocation4 [shape = 's32[1]{0}', space=sflag, size = 0x4, scoped, tag = 'scoped memory for tpu_custom_call.1']
    #allocation5 [shape = 'u8[2048]{0}', space=vmem, size = 0x800, scoped, tag = 'output window, operand 0, single buffered']
    #allocation6 [shape = 'u8[512]{0}', space=vmem, size = 0x400, scoped, tag = 'output window, operand 1, single buffered']
    #allocation7 [shape = 's32[1]{0}', space=sflag, size = 0x4, scoped, tag = 'scoped memory for tpu_custom_call.1']
    %8 = vsyncpa [#allocation3], 0
    %9 = vsyncpa [#allocation4], 0
    %10 = vsyncpa [#allocation7], 0
    // Predicated region
    $region2: #{tpu_custom_call.1} parent=1 // pred_check
      _
    $region3: #{tpu_custom_call.1} parent=1 // pred_check_branch
      %12 = sbr.rel (0) target = $region5
    $region4: #{tpu_custom_call.1} parent=1 // pred_region
      %s14 = ssub.s32 768, 768
      %15 = vsyncadd [#allocation3], %s14
      %s16 = sshll.u32 [#allocation2], 4
      %s17 = int_to_ptr.vmem [resolvable:$true] %s16
      %22 = dma.hbm_to_vmem [thread:$0]  %s0, 768, %s17, [#allocation3], 128, 128, 8
    $region5: #{tpu_custom_call.1} parent=1 // pred_fallthru
      _
    // Predicated region
    $region6: #{tpu_custom_call.1} parent=1 // pred_check
      _
    $region7: #{tpu_custom_call.1} parent=1 // pred_check_branch
      %24 = sbr.rel (0) target = $region9
    $region8: #{tpu_custom_call.1} parent=1 // pred_region
      %25 = dma.done [#allocation3], 768
    $region9: #{tpu_custom_call.1} parent=1 // pred_fallthru
      _
    %v26 = vld [vmem:[#allocation2] sm:$0xff]
    %v27 = vld [vmem:[#allocation2 + $0x8] sm:$0xff]
    %v28 = vld [vmem:[#allocation2 + $0x10] sm:$0xff]
    %v29 = vld [vmem:[#allocation2 + $0x18] sm:$0xff]
    %v30 = vld [vmem:[#allocation2 + $0x20] sm:$0xff]
    %v31 = vld [vmem:[#allocation2 + $0x28] sm:$0xff]
    %vm38 = vcmask 1046528
    %v39 = vrot.slane %v26, 1
    %v40 = vrot.slane %v27, 1
    %v41 = vsel %vm38, %v39, %v40
    %v42 = vrot.slane %v28, 1
    %v43 = vsel %vm38, %v40, %v42
    %v44 = vrot.slane %v29, 1
    %v45 = vrot.slane %v30, 1
    %v46 = vsel %vm38, %v44, %v45
    %v47 = vrot.slane %v31, 1
    %v48 = vsel %vm38, %v45, %v47
    %v53 = vmax.f32 %v26, %v41
    %v54 = vmax.f32 %v27, %v43
    %v55 = vmax.f32 %v29, %v46
    %v56 = vmax.f32 %v30, %v48
    %vm57 = vcmask 1045504
    %v58 = vrot.slane %v26, 2
    %v59 = vrot.slane %v27, 2
    %v60 = vsel %vm57, %v58, %v59
    %v61 = vrot.slane %v28, 2
    %v62 = vsel %vm57, %v59, %v61
    %v63 = vrot.slane %v29, 2
    %v64 = vrot.slane %v30, 2
    %v65 = vsel %vm57, %v63, %v64
    %v66 = vrot.slane %v31, 2
    %v67 = vsel %vm57, %v64, %v66
    %v72 = vmax.f32 %v53, %v60
    %v73 = vmax.f32 %v54, %v62
    %v74 = vmax.f32 %v55, %v65
    %v75 = vmax.f32 %v56, %v67
    %80 = vrot.lane.b32.xlu0 %v72, 127
    %v81 = vpop.permute.xlu0 %80
    %82 = vrot.lane.b32.xlu0 %v73, 127
    %v83 = vpop.permute.xlu0 %82
    %84 = vrot.lane.b32.xlu0 %v74, 127
    %v85 = vpop.permute.xlu0 %84
    %86 = vrot.lane.b32.xlu0 %v75, 127
    %v87 = vpop.permute.xlu0 %86
    %v92 = vmax.f32 %v72, %v81
    %v93 = vmax.f32 %v73, %v83
    %v94 = vmax.f32 %v74, %v85
    %v95 = vmax.f32 %v75, %v87
    %96 = vrot.lane.b32.xlu0 %v72, 126
    %v97 = vpop.permute.xlu0 %96
    %98 = vrot.lane.b32.xlu0 %v73, 126
    %v99 = vpop.permute.xlu0 %98
    %100 = vrot.lane.b32.xlu0 %v74, 126
    %v101 = vpop.permute.xlu0 %100
    %102 = vrot.lane.b32.xlu0 %v75, 126
    %v103 = vpop.permute.xlu0 %102
    %v108 = vmax.f32 %v92, %v97
    %v109 = vmax.f32 %v93, %v99
    %v110 = vmax.f32 %v94, %v101
    %v111 = vmax.f32 %v95, %v103
    %vm112 = vcmp.ge.f32.partialorder %v108, 1.0
    %vm113 = vcmp.ge.f32.partialorder %v109, 1.0
    %vm114 = vcmp.ge.f32.partialorder %v110, 1.0
    %vm115 = vcmp.ge.f32.partialorder %v111, 1.0
    %v116 = vsel %vm112, 0.0, 1.0
    %v117 = vsel %vm113, 0.0, 1.0
    %v118 = vsel %vm114, 0.0, 1.0
    %v119 = vsel %vm115, 0.0, 1.0
    %v120 = vlaneseq
    %vm121 = vcmp.ge.s32.totalorder %v120, 0
    %vm122 = vcmp.lt.s32.totalorder %v120, 16
    %vm123 = vmand %vm121, %vm122
    %124 = vst.msk [vmem:[#allocation5] sm:$0x1] %vm123, %v116
    %125 = vst.msk [vmem:[#allocation5 + $0x2] sm:$0x1] %vm123, %v118
    %v129 = vunpack.c.l.s4 1966171168
    %v130 = vunpack.c.0.s8 %v129
    %v131 = vlaneseq
    %v132 = vshrl.u32 %v131, 7
    %v133 = vsub.s32 %v130, %v132
    %v134 = vrot.slane %v116, %v133
    %v135 = vcombine.high %v134, %v134
    %v137 = vunpack.c.l.s4 1966171168
    %v138 = vunpack.c.0.s8 %v137
    %v139 = vlaneseq
    %v140 = vshrl.u32 %v139, 7
    %v141 = vsub.s32 %v138, %v140
    %v142 = vrot.slane %v134, %v141
    %v144 = vunpack.c.l.s4 1966171168
    %v145 = vunpack.c.0.s8 %v144
    %v146 = vlaneseq
    %v147 = vshrl.u32 %v146, 7
    %v148 = vsub.s32 %v145, %v147
    %v149 = vrot.slane %v135, %v148
    %v151 = vunpack.c.l.s4 1966171168
    %v152 = vunpack.c.0.s8 %v151
    %v153 = vlaneseq
    %v154 = vshrl.u32 %v153, 7
    %v155 = vsub.s32 %v152, %v154
    %v156 = vrot.slane %v118, %v155
    %v157 = vcombine.high %v156, %v156
    %v159 = vunpack.c.l.s4 1966171168
    %v160 = vunpack.c.0.s8 %v159
    %v161 = vlaneseq
    %v162 = vshrl.u32 %v161, 7
    %v163 = vsub.s32 %v160, %v162
    %v164 = vrot.slane %v156, %v163
    %v166 = vunpack.c.l.s4 1966171168
    %v167 = vunpack.c.0.s8 %v166
    %v168 = vlaneseq
    %v169 = vshrl.u32 %v168, 7
    %v170 = vsub.s32 %v167, %v169
    %v171 = vrot.slane %v157, %v170
    %172 = vrot.lane.b32.xlu0 %v149, 16
    %v173 = vpop.permute.xlu0 %172
    %174 = vrot.lane.b32.xlu0 %v171, 16
    %v175 = vpop.permute.xlu0 %174
    %vm178 = vcmp.ge.s32.totalorder %v120, 16
    %vm179 = vcmp.lt.s32.totalorder %v120, 32
    %vm180 = vmand %vm178, %vm179
    %181 = vst.msk [vmem:[#allocation5] sm:$0x1] %vm180, %v173
    %182 = vst.msk [vmem:[#allocation5 + $0x2] sm:$0x1] %vm180, %v175
    %v183 = vcombine.high %v142, %v142
    %v184 = vcombine.high %v164, %v164
    %185 = vrot.lane.b32.xlu0 %v183, 32
    %v186 = vpop.permute.xlu0 %185
    %187 = vrot.lane.b32.xlu0 %v184, 32
    %v188 = vpop.permute.xlu0 %187
    %vm191 = vcmp.ge.s32.totalorder %v120, 32
    %vm192 = vcmp.lt.s32.totalorder %v120, 48
    %vm193 = vmand %vm191, %vm192
    %194 = vst.msk [vmem:[#allocation5] sm:$0x1] %vm193, %v186
    %195 = vst.msk [vmem:[#allocation5 + $0x2] sm:$0x1] %vm193, %v188
    %v196 = vcombine.high %v149, %v149
    %v197 = vcombine.high %v171, %v171
    %198 = vrot.lane.b32.xlu0 %v196, 48
    %v199 = vpop.permute.xlu0 %198
    %200 = vrot.lane.b32.xlu0 %v197, 48
    %v201 = vpop.permute.xlu0 %200
    %vm204 = vcmp.ge.s32.totalorder %v120, 48
    %vm205 = vcmp.lt.s32.totalorder %v120, 64
    %vm206 = vmand %vm204, %vm205
    %207 = vst.msk [vmem:[#allocation5] sm:$0x1] %vm206, %v199
    %208 = vst.msk [vmem:[#allocation5 + $0x2] sm:$0x1] %vm206, %v201
    %v209 = vcombine.high %v116, %v116
    %v211 = vunpack.c.l.s4 1966171168
    %v212 = vunpack.c.0.s8 %v211
    %v213 = vlaneseq
    %v214 = vshrl.u32 %v213, 7
    %v215 = vsub.s32 %v212, %v214
    %v216 = vrot.slane %v209, %v215
    %v218 = vunpack.c.l.s4 1966171168
    %v219 = vunpack.c.0.s8 %v218
    %v220 = vlaneseq
    %v221 = vshrl.u32 %v220, 7
    %v222 = vsub.s32 %v219, %v221
    %v223 = vrot.slane %v216, %v222
    %v224 = vcombine.high %v118, %v118
    %v226 = vunpack.c.l.s4 1966171168
    %v227 = vunpack.c.0.s8 %v226
    %v228 = vlaneseq
    %v229 = vshrl.u32 %v228, 7
    %v230 = vsub.s32 %v227, %v229
    %v231 = vrot.slane %v224, %v230
    %v233 = vunpack.c.l.s4 1966171168
    %v234 = vunpack.c.0.s8 %v233
    %v235 = vlaneseq
    %v236 = vshrl.u32 %v235, 7
    %v237 = vsub.s32 %v234, %v236
    %v238 = vrot.slane %v231, %v237
    %239 = vrot.lane.b32.xlu0 %v223, 64
    %v240 = vpop.permute.xlu0 %239
    %241 = vrot.lane.b32.xlu0 %v238, 64
    %v242 = vpop.permute.xlu0 %241
    %vm245 = vcmp.ge.s32.totalorder %v120, 64
    %vm246 = vcmp.lt.s32.totalorder %v120, 80
    %vm247 = vmand %vm245, %vm246
    %248 = vst.msk [vmem:[#allocation5] sm:$0x1] %vm247, %v240
    %249 = vst.msk [vmem:[#allocation5 + $0x2] sm:$0x1] %vm247, %v242
    %v250 = vcombine.high %v216, %v216
    %v252 = vunpack.c.l.s4 1966171168
    %v253 = vunpack.c.0.s8 %v252
    %v254 = vlaneseq
    %v255 = vshrl.u32 %v254, 7
    %v256 = vsub.s32 %v253, %v255
    %v257 = vrot.slane %v250, %v256
    %v258 = vcombine.high %v231, %v231
    %v260 = vunpack.c.l.s4 1966171168
    %v261 = vunpack.c.0.s8 %v260
    %v262 = vlaneseq
    %v263 = vshrl.u32 %v262, 7
    %v264 = vsub.s32 %v261, %v263
    %v265 = vrot.slane %v258, %v264
    %266 = vrot.lane.b32.xlu0 %v257, 80
    %v267 = vpop.permute.xlu0 %266
    %268 = vrot.lane.b32.xlu0 %v265, 80
    %v269 = vpop.permute.xlu0 %268
    %vm272 = vcmp.ge.s32.totalorder %v120, 80
    %vm273 = vcmp.lt.s32.totalorder %v120, 96
    %vm274 = vmand %vm272, %vm273
    %275 = vst.msk [vmem:[#allocation5] sm:$0x1] %vm274, %v267
    %276 = vst.msk [vmem:[#allocation5 + $0x2] sm:$0x1] %vm274, %v269
    %v277 = vcombine.high %v223, %v223
    %v278 = vcombine.high %v238, %v238
    %279 = vrot.lane.b32.xlu0 %v277, 96
    %v280 = vpop.permute.xlu0 %279
    %281 = vrot.lane.b32.xlu0 %v278, 96
    %v282 = vpop.permute.xlu0 %281
    %vm285 = vcmp.ge.s32.totalorder %v120, 96
    %vm286 = vcmp.lt.s32.totalorder %v120, 112
    %vm287 = vmand %vm285, %vm286
    %288 = vst.msk [vmem:[#allocation5] sm:$0x1] %vm287, %v280
    %289 = vst.msk [vmem:[#allocation5 + $0x2] sm:$0x1] %vm287, %v282
    %v290 = vcombine.high %v257, %v257
    %v291 = vcombine.high %v265, %v265
    %292 = vrot.lane.b32.xlu0 %v290, 112
    %v293 = vpop.permute.xlu0 %292
    %294 = vrot.lane.b32.xlu0 %v291, 112
    %v295 = vpop.permute.xlu0 %294
    %vm298 = vcmp.ge.s32.totalorder %v120, 112
    %vm299 = vcmp.lt.s32.totalorder %v120, 128
    %vm300 = vmand %vm298, %vm299
    %301 = vst.msk [vmem:[#allocation5] sm:$0x1] %vm300, %v293
    %302 = vst.msk [vmem:[#allocation5 + $0x2] sm:$0x1] %vm300, %v295
    %303 = vst.msk [vmem:[#allocation5 + $0x1] sm:$0x1] %vm123, %v117
    %304 = vst.msk [vmem:[#allocation5 + $0x3] sm:$0x1] %vm123, %v119
    %v308 = vunpack.c.l.s4 1966171168
    %v309 = vunpack.c.0.s8 %v308
    %v310 = vlaneseq
    %v311 = vshrl.u32 %v310, 7
    %v312 = vsub.s32 %v309, %v311
    %v313 = vrot.slane %v117, %v312
    %v314 = vcombine.high %v313, %v313
    %v316 = vunpack.c.l.s4 1966171168
    %v317 = vunpack.c.0.s8 %v316
    %v318 = vlaneseq
    %v319 = vshrl.u32 %v318, 7
    %v320 = vsub.s32 %v317, %v319
    %v321 = vrot.slane %v313, %v320
    %v323 = vunpack.c.l.s4 1966171168
    %v324 = vunpack.c.0.s8 %v323
    %v325 = vlaneseq
    %v326 = vshrl.u32 %v325, 7
    %v327 = vsub.s32 %v324, %v326
    %v328 = vrot.slane %v314, %v327
    %v330 = vunpack.c.l.s4 1966171168
    %v331 = vunpack.c.0.s8 %v330
    %v332 = vlaneseq
    %v333 = vshrl.u32 %v332, 7
    %v334 = vsub.s32 %v331, %v333
    %v335 = vrot.slane %v119, %v334
    %v336 = vcombine.high %v335, %v335
    %v338 = vunpack.c.l.s4 1966171168
    %v339 = vunpack.c.0.s8 %v338
    %v340 = vlaneseq
    %v341 = vshrl.u32 %v340, 7
    %v342 = vsub.s32 %v339, %v341
    %v343 = vrot.slane %v335, %v342
    %v345 = vunpack.c.l.s4 1966171168
    %v346 = vunpack.c.0.s8 %v345
    %v347 = vlaneseq
    %v348 = vshrl.u32 %v347, 7
    %v349 = vsub.s32 %v346, %v348
    %v350 = vrot.slane %v336, %v349
    %351 = vrot.lane.b32.xlu0 %v328, 16
    %v352 = vpop.permute.xlu0 %351
    %353 = vrot.lane.b32.xlu0 %v350, 16
    %v354 = vpop.permute.xlu0 %353
    %357 = vst.msk [vmem:[#allocation5 + $0x1] sm:$0x1] %vm180, %v352
    %358 = vst.msk [vmem:[#allocation5 + $0x3] sm:$0x1] %vm180, %v354
    %v359 = vcombine.high %v321, %v321
    %v360 = vcombine.high %v343, %v343
    %361 = vrot.lane.b32.xlu0 %v359, 32
    %v362 = vpop.permute.xlu0 %361
    %363 = vrot.lane.b32.xlu0 %v360, 32
    %v364 = vpop.permute.xlu0 %363
    %367 = vst.msk [vmem:[#allocation5 + $0x1] sm:$0x1] %vm193, %v362
    %368 = vst.msk [vmem:[#allocation5 + $0x3] sm:$0x1] %vm193, %v364
    %v369 = vcombine.high %v328, %v328
    %v370 = vcombine.high %v350, %v350
    %371 = vrot.lane.b32.xlu0 %v369, 48
    %v372 = vpop.permute.xlu0 %371
    %373 = vrot.lane.b32.xlu0 %v370, 48
    %v374 = vpop.permute.xlu0 %373
    %377 = vst.msk [vmem:[#allocation5 + $0x1] sm:$0x1] %vm206, %v372
    %378 = vst.msk [vmem:[#allocation5 + $0x3] sm:$0x1] %vm206, %v374
    %v379 = vcombine.high %v117, %v117
    %v381 = vunpack.c.l.s4 1966171168
    %v382 = vunpack.c.0.s8 %v381
    %v383 = vlaneseq
    %v384 = vshrl.u32 %v383, 7
    %v385 = vsub.s32 %v382, %v384
    %v386 = vrot.slane %v379, %v385
    %v388 = vunpack.c.l.s4 1966171168
    %v389 = vunpack.c.0.s8 %v388
    %v390 = vlaneseq
    %v391 = vshrl.u32 %v390, 7
    %v392 = vsub.s32 %v389, %v391
    %v393 = vrot.slane %v386, %v392
    %v394 = vcombine.high %v119, %v119
    %v396 = vunpack.c.l.s4 1966171168
    %v397 = vunpack.c.0.s8 %v396
    %v398 = vlaneseq
    %v399 = vshrl.u32 %v398, 7
    %v400 = vsub.s32 %v397, %v399
    %v401 = vrot.slane %v394, %v400
    %v403 = vunpack.c.l.s4 1966171168
    %v404 = vunpack.c.0.s8 %v403
    %v405 = vlaneseq
    %v406 = vshrl.u32 %v405, 7
    %v407 = vsub.s32 %v404, %v406
    %v408 = vrot.slane %v401, %v407
    %409 = vrot.lane.b32.xlu0 %v393, 64
    %v410 = vpop.permute.xlu0 %409
    %411 = vrot.lane.b32.xlu0 %v408, 64
    %v412 = vpop.permute.xlu0 %411
    %415 = vst.msk [vmem:[#allocation5 + $0x1] sm:$0x1] %vm247, %v410
    %416 = vst.msk [vmem:[#allocation5 + $0x3] sm:$0x1] %vm247, %v412
    %v417 = vcombine.high %v386, %v386
    %v419 = vunpack.c.l.s4 1966171168
    %v420 = vunpack.c.0.s8 %v419
    %v421 = vlaneseq
    %v422 = vshrl.u32 %v421, 7
    %v423 = vsub.s32 %v420, %v422
    %v424 = vrot.slane %v417, %v423
    %v425 = vcombine.high %v401, %v401
    %v427 = vunpack.c.l.s4 1966171168
    %v428 = vunpack.c.0.s8 %v427
    %v429 = vlaneseq
    %v430 = vshrl.u32 %v429, 7
    %v431 = vsub.s32 %v428, %v430
    %v432 = vrot.slane %v425, %v431
    %433 = vrot.lane.b32.xlu0 %v424, 80
    %v434 = vpop.permute.xlu0 %433
    %435 = vrot.lane.b32.xlu0 %v432, 80
    %v436 = vpop.permute.xlu0 %435
    %439 = vst.msk [vmem:[#allocation5 + $0x1] sm:$0x1] %vm274, %v434
    %440 = vst.msk [vmem:[#allocation5 + $0x3] sm:$0x1] %vm274, %v436
    %v441 = vcombine.high %v393, %v393
    %v442 = vcombine.high %v408, %v408
    %443 = vrot.lane.b32.xlu0 %v441, 96
    %v444 = vpop.permute.xlu0 %443
    %445 = vrot.lane.b32.xlu0 %v442, 96
    %v446 = vpop.permute.xlu0 %445
    %449 = vst.msk [vmem:[#allocation5 + $0x1] sm:$0x1] %vm287, %v444
    %450 = vst.msk [vmem:[#allocation5 + $0x3] sm:$0x1] %vm287, %v446
    %v451 = vcombine.high %v424, %v424
    %v452 = vcombine.high %v432, %v432
    %453 = vrot.lane.b32.xlu0 %v451, 112
    %v454 = vpop.permute.xlu0 %453
    %455 = vrot.lane.b32.xlu0 %v452, 112
    %v456 = vpop.permute.xlu0 %455
    %459 = vst.msk [vmem:[#allocation5 + $0x1] sm:$0x1] %vm300, %v454
    %460 = vst.msk [vmem:[#allocation5 + $0x3] sm:$0x1] %vm300, %v456
    %p461 = scmp.eq.s32.totalorder 0, 0
    // Predicated region
    $region10: #{tpu_custom_call.1} parent=1 // pred_check
      %p462 = pneg %p461
    $region11: #{tpu_custom_call.1} parent=1 // pred_check_branch
      %464 = sbr.rel (%p462) target = $region13
    $region12: #{tpu_custom_call.1} parent=1 // pred_region
      %vm465 = vcmask 0
      %466 = vst.msk [vmem:[#allocation6] sm:$0x1] %vm465, 0.0
    $region13: #{tpu_custom_call.1} parent=1 // pred_fallthru
      _
    %v467 = vld [vmem:[#allocation6] sm:$0x1]
    %vm468 = vcmask 130048
    %v469 = vsel %vm468, %v116, 0.0
    %v470 = vsel %vm468, %v117, 0.0
    %v471 = vadd.f32 %v469, %v470
    %v472 = vsel %vm468, %v118, 0.0
    %v473 = vadd.f32 %v471, %v472
    %v474 = vsel %vm468, %v119, 0.0
    %v475 = vadd.f32 %v473, %v474
    %476 = vadd.xlane.f32.xlu0 %v475
    %v477 = vpop.xlane.xlu0 %476
    %v478 = vrot.slane %v477, 4
    %v479 = vadd.f32 %v477, %v478
    %v480 = vrot.slane %v479, 2
    %v481 = vadd.f32 %v479, %v480
    %v482 = vrot.slane %v481, 1
    %v483 = vadd.f32 %v481, %v482
    %s484 = vtos %v483
    %v485 = vstv %s484
    %v486 = vadd.f32 %v467, %v485
    %vm487 = vcmask 0
    %488 = vst.msk [vmem:[#allocation6] sm:$0x1] %vm487, %v486
    // Predicated region
    $region14: #{tpu_custom_call.1} parent=1 // pred_check
      _
    $region15: #{tpu_custom_call.1} parent=1 // pred_check_branch
      %490 = sbr.rel (0) target = $region17
    $region16: #{tpu_custom_call.1} parent=1 // pred_region
      %s492 = ssub.s32 64, 64
      %493 = vsyncadd [#allocation4], %s492
      %s494 = sshll.u32 [#allocation5], 4
      %s495 = int_to_ptr.vmem [resolvable:$true] %s494
      %500 = dma.vmem_to_hbm [thread:$0]  %s495, 64, %s1, [#allocation4], 32, 32, 2
    $region17: #{tpu_custom_call.1} parent=1 // pred_fallthru
      _
    // Predicated region
    $region18: #{tpu_custom_call.1} parent=1 // pred_check
      _
    $region19: #{tpu_custom_call.1} parent=1 // pred_check_branch
      %502 = sbr.rel (0) target = $region21
    $region20: #{tpu_custom_call.1} parent=1 // pred_region
      %s504 = ssub.s32 16, 16
      %505 = vsyncadd [#allocation7], %s504
      %s507 = sshll.u32 [#allocation6], 4
      %s508 = int_to_ptr.vmem [resolvable:$true] %s507
      %510 = dma.vmem_to_hbm [thread:$0]  %s508, 16, %s2, [#allocation7]
    $region21: #{tpu_custom_call.1} parent=1 // pred_fallthru
      _
    // Predicated region
    $region22: #{tpu_custom_call.1} parent=1 // pred_check
      _
    $region23: #{tpu_custom_call.1} parent=1 // pred_check_branch
      %512 = sbr.rel (0) target = $region25
    $region24: #{tpu_custom_call.1} parent=1 // pred_region
      %513 = dma.done [#allocation4], 64
    $region25: #{tpu_custom_call.1} parent=1 // pred_fallthru
      _
    // Predicated region
    $region26: #{tpu_custom_call.1} parent=1 // pred_check
      _
    $region27: #{tpu_custom_call.1} parent=1 // pred_check_branch
      %515 = sbr.rel (0) target = $region29
    $region28: #{tpu_custom_call.1} parent=1 // pred_region
      %516 = dma.done [#allocation7], 16
    $region29: #{tpu_custom_call.1} parent=1 // pred_fallthru
      _
    %517 = vsyncpa [#allocation3], 1
    %518 = vsyncpa [#allocation4], 1
    %519 = vsyncpa [#allocation7], 1

</llo_original>
